<compile_context>
chip_gen: v7x
topology: tpu7x:2x2x1
jax: 0.10.0
libtpu: 0.0.40
codegen_flags: <defaults>
</compile_context>

<pallas_src>
from functools import partial

import numpy as np
import jax
import jax.numpy as jnp
from jax.experimental import pallas as pl
from jax.experimental.pallas import tpu as pltpu


def branch2_kernel(x_ref, w1_ref, w2_ref, pc_ref, msk_ref, out_ref, *, width):
    """Fused ShuffleNetV2 stride-1 block for Nb images (channel-major).

    x_ref  : (Nb, C, HW)     input images, flattened spatial on lanes
    w1_ref : (Cb, Cb)        bf16 1x1 conv #1 weight (Cout, Cin), BN1 scale folded
    w2_ref : (Cb, Cb)        bf16 1x1 conv #2 weight (Cout, Cin), BN3 scale folded
    pc_ref : (Cb, 12)        f32 per-channel params: cols 0..8 = depthwise 3x3
                             taps (BN2 scale folded), cols 9/10/11 = b1/b2/b3
    msk_ref: (2, HW)         f32 {0,1}: row 0 = (w != 0), row 1 = (w != W-1)
    out_ref: (Nb, Cb, 2*HW)  channel row i: lanes [0,HW) = x1_i (passthrough),
                             lanes [HW,2HW) = branch2_i.  Reinterpreted by the
                             wrapper as the channel-shuffled (N, C, H, W).
    """
    Nb, C, HW = x_ref.shape
    Cb = C // 2
    W = width

    # Hoisted: shared across all Nb images of this grid step.
    w1 = w1_ref[...]                                # (Cb, Cb) bf16
    w2 = w2_ref[...]                                # (Cb, Cb) bf16
    pc = pc_ref[...]                                # (Cb, 12) f32
    not_first_col = msk_ref[0:1, :]                 # (1, HW), broadcasts over Cb
    not_last_col = msk_ref[1:2, :]                  # (1, HW)
    k = [pc[:, j:j + 1] for j in range(9)]          # per-channel taps, (Cb, 1)
    b1, b2, b3 = pc[:, 9:10], pc[:, 10:11], pc[:, 11:12]

    def shift_down(a, s):
        # out[:, p] = a[:, p - s]  (zero fill for p < s)
        return jnp.concatenate(
            [jnp.zeros((a.shape[0], s), a.dtype), a[:, :HW - s]], axis=1)

    def shift_up(a, s):
        # out[:, p] = a[:, p + s]  (zero fill for p >= HW - s)
        return jnp.concatenate(
            [a[:, s:], jnp.zeros((a.shape[0], s), a.dtype)], axis=1)

    for b in range(Nb):                             # static unroll over images
        x1 = x_ref[b, :Cb, :]                       # passthrough half (exact f32)
        x2 = x_ref[b, Cb:, :]                       # branch2 half

        # --- 1x1 conv (BN1 scale folded) + bias + ReLU; bf16 MXU, f32 accum --
        y = jnp.dot(w1, x2.astype(jnp.bfloat16),
                    preferred_element_type=jnp.float32)          # (Cb, HW)
        y = jnp.maximum(y + b1, 0.0)

        # --- depthwise 3x3, stride 1, pad 1, on the flattened spatial axis ---
        # Row-shifted bases, computed once (zero fill == row-edge handling).
        up = shift_down(y, W)                       # y[h-1, w]
        dn = shift_up(y, W)                         # y[h+1, w]
        # Per-column-direction weighted sums; the +/-1 lane shift and the two
        # channel-invariant column masks are applied once per direction.
        center = up * k[1] + y * k[4] + dn * k[7]
        left_src = up * k[0] + y * k[3] + dn * k[6]
        right_src = up * k[2] + y * k[5] + dn * k[8]
        z = (center
             + shift_down(left_src, 1) * not_first_col
             + shift_up(right_src, 1) * not_last_col
             + b2)                                  # + BN2 bias (scale folded)

        # --- 1x1 conv (BN3 scale folded) + bias + ReLU ------------------------
        o = jnp.dot(w2, z.astype(jnp.bfloat16),
                    preferred_element_type=jnp.float32)          # (Cb, HW)
        o = jnp.maximum(o + b3, 0.0)

        # --- fused concat + channel_shuffle(groups=2): dense, aligned stores --
        out_ref[b, :, :HW] = x1
        out_ref[b, :, HW:] = o


def _images_per_step(n):
    """Amortize per-grid-step pipeline overhead while keeping >= 2 grid steps
    so the batch axis can still be split across TensorCores (v7x megacore)."""
    for nb in (8, 4, 2):
        if n % nb == 0 and n // nb >= 2:
            return nb
    return 1


def inverted_residual_stride1(x_nchw, params):
    """InvertedResidual.forward for stride=1 (input_c == output_c), NCHW in/out."""
    N, C, H, W = x_nchw.shape
    Cb = C // 2
    HW = H * W
    Nb = _images_per_step(N)

    # Fold inference-BatchNorm scales into the conv / depthwise weights.
    w1f = (params["w1"] * params["s1"][:, None]).astype(jnp.bfloat16)   # (Cb, Cb)
    w2f = (params["w2"] * params["s3"][:, None]).astype(jnp.bfloat16)   # (Cb, Cb)
    dwkf = params["dwk"].reshape(Cb, 9) * params["s2"][:, None]         # (Cb, 9)
    pc = jnp.concatenate(
        [dwkf, params["b1"][:, None], params["b2"][:, None], params["b3"][:, None]],
        axis=1).astype(jnp.float32)                                     # (Cb, 12)

    # Channel-invariant column-edge masks, precomputed once (works for any W,
    # no in-kernel integer modulo).
    col = np.arange(HW) % W
    masks = jnp.asarray(
        np.stack([(col != 0), (col != W - 1)]).astype(np.float32))      # (2, HW)

    x_flat = x_nchw.reshape(N, C, HW)        # free reshape, stays channel-major

    out = pl.pallas_call(
        partial(branch2_kernel, width=W),
        out_shape=jax.ShapeDtypeStruct((N, Cb, 2 * HW), jnp.float32),
        grid=(N // Nb,),
        in_specs=[
            pl.BlockSpec((Nb, C, HW), lambda n: (n, 0, 0)),   # Nb images / step
            pl.BlockSpec((Cb, Cb), lambda n: (0, 0)),         # w1 (bf16, folded)
            pl.BlockSpec((Cb, Cb), lambda n: (0, 0)),         # w2 (bf16, folded)
            pl.BlockSpec((Cb, 12), lambda n: (0, 0)),         # packed per-chan params
            pl.BlockSpec((2, HW), lambda n: (0, 0)),          # column-edge masks
        ],
        out_specs=pl.BlockSpec((Nb, Cb, 2 * HW), lambda n: (n, 0, 0)),
        compiler_params=pltpu.CompilerParams(dimension_semantics=("parallel",)),
    )(x_flat, w1f, w2f, pc, masks)

    # (N, Cb, 2*HW) -> (N, C, H, W) is a free contiguous reshape that already
    # realizes concat + channel_shuffle(groups=2): channel 2i = x1_i (even),
    # channel 2i+1 = branch2_i (odd).
    return out.reshape(N, C, H, W)


def ref_forward(x, p):
    """Pure-JAX f32 reference of the stride=1 forward (NCHW, einsum/pad based)."""
    N, C, H, W = x.shape
    Cb = C // 2
    hi = jax.lax.Precision.HIGHEST
    x1, x2 = x[:, :Cb], x[:, Cb:]

    def bn(v, s, b):
        return v * s[None, :, None, None] + b[None, :, None, None]

    y = jnp.einsum('oc,nchw->nohw', p['w1'], x2, precision=hi)
    y = jnp.maximum(bn(y, p['s1'], p['b1']), 0.0)
    yp = jnp.pad(y, ((0, 0), (0, 0), (1, 1), (1, 1)))
    z = jnp.zeros_like(y)
    for dh in range(3):
        for dw in range(3):
            z = z + yp[:, :, dh:dh + H, dw:dw + W] * p['dwk'][None, :, dh, dw, None, None]
    z = bn(z, p['s2'], p['b2'])
    o = jnp.einsum('oc,nchw->nohw', p['w2'], z, precision=hi)
    o = jnp.maximum(bn(o, p['s3'], p['b3']), 0.0)
    out = jnp.concatenate([x1, o], axis=1)
    out = out.reshape(N, 2, Cb, H, W).transpose(0, 2, 1, 3, 4).reshape(N, C, H, W)
    return out


def make_bn(key, c, eps=1e-5):
    """Deterministic BatchNorm params folded to (scale, bias), shape (c,)."""
    k1, k2, k3, k4 = jax.random.split(key, 4)
    gamma = jax.random.uniform(k1, (c,), minval=0.5, maxval=1.5)
    beta = jax.random.normal(k2, (c,)) * 0.1
    mean = jax.random.normal(k3, (c,)) * 0.1
    var = jax.random.uniform(k4, (c,), minval=0.5, maxval=1.5)
    scale = gamma / jnp.sqrt(var + eps)
    bias = beta - mean * scale
    return scale.astype(jnp.float32), bias.astype(jnp.float32)


if __name__ == "__main__":
    # stride=1 InvertedResidual requires input_c == output_c == 2 * branch_features
    N, Cin, H, W = 2, 32, 16, 16
    Cb = Cin // 2

    key = jax.random.PRNGKey(0)
    ks = jax.random.split(key, 8)

    x = jax.random.normal(ks[0], (N, Cin, H, W), dtype=jnp.float32)

    params = {
        "w1": jax.random.normal(ks[1], (Cb, Cb), dtype=jnp.float32) * 0.1,   # (Cout, Cin)
        "dwk": jax.random.normal(ks[2], (Cb, 3, 3), dtype=jnp.float32) * 0.1,
        "w2": jax.random.normal(ks[3], (Cb, Cb), dtype=jnp.float32) * 0.1,   # (Cout, Cin)
    }
    params["s1"], params["b1"] = make_bn(ks[4], Cb)
    params["s2"], params["b2"] = make_bn(ks[5], Cb)
    params["s3"], params["b3"] = make_bn(ks[6], Cb)

    out = jax.jit(inverted_residual_stride1)(x, params)
    out = jax.block_until_ready(out)

    ref = ref_forward(x, params)
    assert out.shape == (N, Cin, H, W), out.shape
    err = float(jnp.max(jnp.abs(out - ref)))
    # Kernel uses bf16 MXU inputs (per perf review) vs an f32 HIGHEST-precision
    # reference, so the tolerance is loosened accordingly.
    assert err < 2e-2, f"max abs err {err}"

    print("KERNEL_OK")
</pallas_src>

<mosaic_0001>
module attributes {stable_mosaic.version = 11 : i64} {
  func.func @branch2_kernel(%arg0: i32, %arg1: memref<1x32x256xf32, #tpu.memory_space<vmem>>, %arg2: memref<16x16xbf16, #tpu.memory_space<vmem>>, %arg3: memref<16x16xbf16, #tpu.memory_space<vmem>>, %arg4: memref<16x12xf32, #tpu.memory_space<vmem>>, %arg5: memref<2x256xf32, #tpu.memory_space<vmem>>, %arg6: memref<1x16x512xf32, #tpu.memory_space<vmem>>) attributes {dimension_semantics = [#tpu.dimension_semantics<parallel>], iteration_bounds = array<i64: 2>, scalar_prefetch = 0 : i64, scratch_operands = 0 : i64, tpu.core_type = #tpu.core_type<tc>, window_params = [{transform_indices = @transform_0, window_bounds = array<i64: 1, 32, 256>}, {pipeline_mode = #tpu.pipeline_mode<synchronous>, transform_indices = @transform_1, window_bounds = array<i64: 16, 16>}, {pipeline_mode = #tpu.pipeline_mode<synchronous>, transform_indices = @transform_2, window_bounds = array<i64: 16, 16>}, {pipeline_mode = #tpu.pipeline_mode<synchronous>, transform_indices = @transform_3, window_bounds = array<i64: 16, 12>}, {pipeline_mode = #tpu.pipeline_mode<synchronous>, transform_indices = @transform_4, window_bounds = array<i64: 2, 256>}, {transform_indices = @transform_5, window_bounds = array<i64: 1, 16, 512>}]} {
    %c0 = arith.constant 0 : index
    %c0_0 = arith.constant 0 : index
    %0 = vector.load %arg2[%c0, %c0_0] : memref<16x16xbf16, #tpu.memory_space<vmem>>, vector<16x16xbf16>
    %c0_1 = arith.constant 0 : index
    %c0_2 = arith.constant 0 : index
    %1 = vector.load %arg3[%c0_1, %c0_2] : memref<16x16xbf16, #tpu.memory_space<vmem>>, vector<16x16xbf16>
    %c0_3 = arith.constant 0 : index
    %c0_4 = arith.constant 0 : index
    %2 = vector.load %arg4[%c0_3, %c0_4] : memref<16x12xf32, #tpu.memory_space<vmem>>, vector<16x12xf32>
    %c0_5 = arith.constant 0 : index
    %c0_6 = arith.constant 0 : index
    %3 = vector.load %arg5[%c0_5, %c0_6] : memref<2x256xf32, #tpu.memory_space<vmem>>, vector<1x256xf32>
    %c1 = arith.constant 1 : index
    %c0_7 = arith.constant 0 : index
    %4 = vector.load %arg5[%c1, %c0_7] : memref<2x256xf32, #tpu.memory_space<vmem>>, vector<1x256xf32>
    %5 = vector.extract_strided_slice %2 {offsets = [0, 0], sizes = [16, 1], strides = [1, 1]} : vector<16x12xf32> to vector<16x1xf32>
    %6 = vector.extract_strided_slice %2 {offsets = [0, 1], sizes = [16, 1], strides = [1, 1]} : vector<16x12xf32> to vector<16x1xf32>
    %7 = vector.extract_strided_slice %2 {offsets = [0, 2], sizes = [16, 1], strides = [1, 1]} : vector<16x12xf32> to vector<16x1xf32>
    %8 = vector.extract_strided_slice %2 {offsets = [0, 3], sizes = [16, 1], strides = [1, 1]} : vector<16x12xf32> to vector<16x1xf32>
    %9 = vector.extract_strided_slice %2 {offsets = [0, 4], sizes = [16, 1], strides = [1, 1]} : vector<16x12xf32> to vector<16x1xf32>
    %10 = vector.extract_strided_slice %2 {offsets = [0, 5], sizes = [16, 1], strides = [1, 1]} : vector<16x12xf32> to vector<16x1xf32>
    %11 = vector.extract_strided_slice %2 {offsets = [0, 6], sizes = [16, 1], strides = [1, 1]} : vector<16x12xf32> to vector<16x1xf32>
    %12 = vector.extract_strided_slice %2 {offsets = [0, 7], sizes = [16, 1], strides = [1, 1]} : vector<16x12xf32> to vector<16x1xf32>
    %13 = vector.extract_strided_slice %2 {offsets = [0, 8], sizes = [16, 1], strides = [1, 1]} : vector<16x12xf32> to vector<16x1xf32>
    %14 = vector.extract_strided_slice %2 {offsets = [0, 9], sizes = [16, 1], strides = [1, 1]} : vector<16x12xf32> to vector<16x1xf32>
    %15 = vector.extract_strided_slice %2 {offsets = [0, 10], sizes = [16, 1], strides = [1, 1]} : vector<16x12xf32> to vector<16x1xf32>
    %16 = vector.extract_strided_slice %2 {offsets = [0, 11], sizes = [16, 1], strides = [1, 1]} : vector<16x12xf32> to vector<16x1xf32>
    %c0_8 = arith.constant 0 : index
    %c0_9 = arith.constant 0 : index
    %c0_10 = arith.constant 0 : index
    %17 = vector.load %arg1[%c0_8, %c0_9, %c0_10] : memref<1x32x256xf32, #tpu.memory_space<vmem>>, vector<1x16x256xf32>
    %18 = vector.shape_cast %17 : vector<1x16x256xf32> to vector<16x256xf32>
    %c0_11 = arith.constant 0 : index
    %c16 = arith.constant 16 : index
    %c0_12 = arith.constant 0 : index
    %19 = vector.load %arg1[%c0_11, %c16, %c0_12] : memref<1x32x256xf32, #tpu.memory_space<vmem>>, vector<1x16x256xf32>
    %20 = vector.shape_cast %19 : vector<1x16x256xf32> to vector<16x256xf32>
    %21 = arith.truncf %20 : vector<16x256xf32> to vector<16x256xbf16>
    %cst = arith.constant dense<0.000000e+00> : vector<16x256xf32>
    %22 = tpu.matmul %0, %21, %cst {dimension_numbers = #tpu.dot_dimension_numbers<[1], [0], [0], [1], [0, 0, 1, 1], [], []>} : vector<16x16xbf16>, vector<16x256xbf16>, vector<16x256xf32> -> vector<16x256xf32>
    %23 = vector.broadcast %14 : vector<16x1xf32> to vector<16x256xf32>
    %24 = arith.addf %22, %23 : vector<16x256xf32>
    %cst_13 = arith.constant 0.000000e+00 : f32
    %25 = vector.broadcast %cst_13 : f32 to vector<16x256xf32>
    %26 = arith.maximumf %24, %25 : vector<16x256xf32>
    %cst_14 = arith.constant 0.000000e+00 : f32
    %27 = vector.broadcast %cst_14 : f32 to vector<16x16xf32>
    %28 = vector.extract_strided_slice %26 {offsets = [0, 0], sizes = [16, 240], strides = [1, 1]} : vector<16x256xf32> to vector<16x240xf32>
    %29 = tpu.concatenate %27, %28 in 1 : vector<16x16xf32>, vector<16x240xf32> -> vector<16x256xf32>
    %30 = vector.extract_strided_slice %26 {offsets = [0, 16], sizes = [16, 240], strides = [1, 1]} : vector<16x256xf32> to vector<16x240xf32>
    %cst_15 = arith.constant 0.000000e+00 : f32
    %31 = vector.broadcast %cst_15 : f32 to vector<16x16xf32>
    %32 = tpu.concatenate %30, %31 in 1 : vector<16x240xf32>, vector<16x16xf32> -> vector<16x256xf32>
    %33 = vector.broadcast %6 : vector<16x1xf32> to vector<16x256xf32>
    %34 = arith.mulf %29, %33 : vector<16x256xf32>
    %35 = vector.broadcast %9 : vector<16x1xf32> to vector<16x256xf32>
    %36 = arith.mulf %26, %35 : vector<16x256xf32>
    %37 = arith.addf %34, %36 : vector<16x256xf32>
    %38 = vector.broadcast %12 : vector<16x1xf32> to vector<16x256xf32>
    %39 = arith.mulf %32, %38 : vector<16x256xf32>
    %40 = arith.addf %37, %39 : vector<16x256xf32>
    %41 = vector.broadcast %5 : vector<16x1xf32> to vector<16x256xf32>
    %42 = arith.mulf %29, %41 : vector<16x256xf32>
    %43 = vector.broadcast %8 : vector<16x1xf32> to vector<16x256xf32>
    %44 = arith.mulf %26, %43 : vector<16x256xf32>
    %45 = arith.addf %42, %44 : vector<16x256xf32>
    %46 = vector.broadcast %11 : vector<16x1xf32> to vector<16x256xf32>
    %47 = arith.mulf %32, %46 : vector<16x256xf32>
    %48 = arith.addf %45, %47 : vector<16x256xf32>
    %49 = vector.broadcast %7 : vector<16x1xf32> to vector<16x256xf32>
    %50 = arith.mulf %29, %49 : vector<16x256xf32>
    %51 = vector.broadcast %10 : vector<16x1xf32> to vector<16x256xf32>
    %52 = arith.mulf %26, %51 : vector<16x256xf32>
    %53 = arith.addf %50, %52 : vector<16x256xf32>
    %54 = vector.broadcast %13 : vector<16x1xf32> to vector<16x256xf32>
    %55 = arith.mulf %32, %54 : vector<16x256xf32>
    %56 = arith.addf %53, %55 : vector<16x256xf32>
    %cst_16 = arith.constant 0.000000e+00 : f32
    %57 = vector.broadcast %cst_16 : f32 to vector<16x1xf32>
    %58 = vector.extract_strided_slice %48 {offsets = [0, 0], sizes = [16, 255], strides = [1, 1]} : vector<16x256xf32> to vector<16x255xf32>
    %59 = tpu.concatenate %57, %58 in 1 : vector<16x1xf32>, vector<16x255xf32> -> vector<16x256xf32>
    %60 = vector.broadcast %3 : vector<1x256xf32> to vector<16x256xf32>
    %61 = arith.mulf %59, %60 : vector<16x256xf32>
    %62 = arith.addf %40, %61 : vector<16x256xf32>
    %63 = vector.extract_strided_slice %56 {offsets = [0, 1], sizes = [16, 255], strides = [1, 1]} : vector<16x256xf32> to vector<16x255xf32>
    %cst_17 = arith.constant 0.000000e+00 : f32
    %64 = vector.broadcast %cst_17 : f32 to vector<16x1xf32>
    %65 = tpu.concatenate %63, %64 in 1 : vector<16x255xf32>, vector<16x1xf32> -> vector<16x256xf32>
    %66 = vector.broadcast %4 : vector<1x256xf32> to vector<16x256xf32>
    %67 = arith.mulf %65, %66 : vector<16x256xf32>
    %68 = arith.addf %62, %67 : vector<16x256xf32>
    %69 = vector.broadcast %15 : vector<16x1xf32> to vector<16x256xf32>
    %70 = arith.addf %68, %69 : vector<16x256xf32>
    %71 = arith.truncf %70 : vector<16x256xf32> to vector<16x256xbf16>
    %cst_18 = arith.constant dense<0.000000e+00> : vector<16x256xf32>
    %72 = tpu.matmul %1, %71, %cst_18 {dimension_numbers = #tpu.dot_dimension_numbers<[1], [0], [0], [1], [0, 0, 1, 1], [], []>} : vector<16x16xbf16>, vector<16x256xbf16>, vector<16x256xf32> -> vector<16x256xf32>
    %73 = vector.broadcast %16 : vector<16x1xf32> to vector<16x256xf32>
    %74 = arith.addf %72, %73 : vector<16x256xf32>
    %cst_19 = arith.constant 0.000000e+00 : f32
    %75 = vector.broadcast %cst_19 : f32 to vector<16x256xf32>
    %76 = arith.maximumf %74, %75 : vector<16x256xf32>
    %c0_20 = arith.constant 0 : index
    %c0_21 = arith.constant 0 : index
    %c0_22 = arith.constant 0 : index
    %77 = vector.load %arg6[%c0_20, %c0_21, %c0_22] : memref<1x16x512xf32, #tpu.memory_space<vmem>>, vector<1x16x256xf32>
    %78 = vector.shape_cast %77 : vector<1x16x256xf32> to vector<16x256xf32>
    %79 = vector.shape_cast %18 : vector<16x256xf32> to vector<1x16x256xf32>
    tpu.vector_store %arg6[%c0_20, %c0_21, %c0_22], %79 {strides = array<i32>} : memref<1x16x512xf32, #tpu.memory_space<vmem>>, vector<1x16x256xf32>,
    %c0_23 = arith.constant 0 : index
    %c0_24 = arith.constant 0 : index
    %c256 = arith.constant 256 : index
    %80 = vector.load %arg6[%c0_23, %c0_24, %c256] : memref<1x16x512xf32, #tpu.memory_space<vmem>>, vector<1x16x256xf32>
    %81 = vector.shape_cast %80 : vector<1x16x256xf32> to vector<16x256xf32>
    %82 = vector.shape_cast %76 : vector<16x256xf32> to vector<1x16x256xf32>
    tpu.vector_store %arg6[%c0_23, %c0_24, %c256], %82 {strides = array<i32>} : memref<1x16x512xf32, #tpu.memory_space<vmem>>, vector<1x16x256xf32>,
    return
  }
  func.func @transform_0(%arg0: i32) -> (i32, i32, i32) {
    %c0_i32 = arith.constant 0 : i32
    %c0_i32_0 = arith.constant 0 : i32
    %c0_i32_1 = arith.constant 0 : i32
    return %arg0, %c0_i32, %c0_i32_0 : i32, i32, i32
  }
  func.func @transform_1(%arg0: i32) -> (i32, i32) {
    %c0_i32 = arith.constant 0 : i32
    %c0_i32_0 = arith.constant 0 : i32
    %c0_i32_1 = arith.constant 0 : i32
    return %c0_i32, %c0_i32_0 : i32, i32
  }
  func.func @transform_2(%arg0: i32) -> (i32, i32) {
    %c0_i32 = arith.constant 0 : i32
    %c0_i32_0 = arith.constant 0 : i32
    %c0_i32_1 = arith.constant 0 : i32
    return %c0_i32, %c0_i32_0 : i32, i32
  }
  func.func @transform_3(%arg0: i32) -> (i32, i32) {
    %c0_i32 = arith.constant 0 : i32
    %c0_i32_0 = arith.constant 0 : i32
    %c0_i32_1 = arith.constant 0 : i32
    return %c0_i32, %c0_i32_0 : i32, i32
  }
  func.func @transform_4(%arg0: i32) -> (i32, i32) {
    %c0_i32 = arith.constant 0 : i32
    %c0_i32_0 = arith.constant 0 : i32
    %c0_i32_1 = arith.constant 0 : i32
    return %c0_i32, %c0_i32_0 : i32, i32
  }
  func.func @transform_5(%arg0: i32) -> (i32, i32, i32) {
    %c0_i32 = arith.constant 0 : i32
    %c0_i32_0 = arith.constant 0 : i32
    %c0_i32_1 = arith.constant 0 : i32
    return %arg0, %c0_i32, %c0_i32_0 : i32, i32, i32
  }
}

</mosaic_0001>

<llo_original>
// kernel: inverted_residual_stride1.1
$region0: #{inverted_residual_stride1.1}
  #allocation0 [shape = 'u32[]', space=smem, size = 0x4, offset = 0x4, fixed_abs, tag = 'smem constant byte address 0x4 - core index']
  #allocation1 [shape = 'u32[144,128]{1,0:T(1,128)}', space=vmem, size = 0x12000, scoped, tag = 'internal scratch']
  %s0 = inlined_call_operand.vmem [shape: f32[2,32,256], index: 0, kind: input, shape index: {}]
  %s1 = inlined_call_operand.vmem [shape: bf16[16,16], index: 1, kind: input, shape index: {}]
  %s2 = inlined_call_operand.vmem [shape: bf16[16,16], index: 2, kind: input, shape index: {}]
  %s3 = inlined_call_operand.vmem [shape: f32[16,12], index: 3, kind: input, shape index: {}]
  %s4 = inlined_call_operand.vmem [shape: f32[2,256], index: 4, kind: input, shape index: {}]
  %s5 = inlined_call_operand.vmem [shape: f32[2,16,512], index: 5, kind: output, shape index: {}]
  %s6 = sld [smem:[#allocation0]]
  $region53: #{inverted_residual_stride1.1} parent=0
    _
  %s8 = ssub.s32 1, %s6
  %s9 = scalar_select 0, %s8, %s6
  loop: start=0, step=1, limit=4
  $region2: #{inverted_residual_stride1.1} parent=0 // loop_pre_header
    _
  $region3: #{inverted_residual_stride1.1} parent=0 // loop_header
    %s11 = sphi 0, %s15
    %p12 = scmp.ge.s32.totalorder %s11, 4
    %s21 = sphi 0, %s23
    %s24 = sphi 0, %s21
    %s25 = sphi 0, %s24
    %s41 = sphi 0, %s25
    %s45 = sphi 0, %s45
    %s47 = sphi 0, %s45
    %s48 = sphi 0, %s47
    %s62 = sphi 0, %s48
    %s66 = sphi 0, %s66
    %s68 = sphi 0, %s66
    %s69 = sphi 0, %s68
    %s83 = sphi 0, %s69
    %s87 = sphi 0, %s87
    %s89 = sphi 0, %s87
    %s90 = sphi 0, %s89
    %s104 = sphi 0, %s90
    %s108 = sphi 0, %s108
    %s110 = sphi 0, %s108
    %s111 = sphi 0, %s110
    %s125 = sphi 0, %s111
    %s131 = sphi 0, %s133
    %s134 = sphi 0, %s131
    %s135 = sphi 0, %s134
    %s151 = sphi 0, %s135
  $region4: #{inverted_residual_stride1.1} parent=0 // loop_header_branch
    %14 = sbr.rel (%p12) target = $region8
  $region5: #{inverted_residual_stride1.1} parent=0 // loop_body
    %s16 = ssub.s32 %s11, 1
    %s17 = ssub.s32 %s11, 2
    %s18 = sadd.s32 %s11, 1
    %s19 = ssub.s32 %s11, %s18
    %p20 = scmp.eq.s32.totalorder %s19, 0
    %s22 = sadd.s32 %s21, 1
    %s23 = scalar_select %p20, %s21, %s22
    %p26 = pneg %p20
    %p27 = scmp.eq.s32.totalorder %s11, 1
    %p28 = por %p26, %p27
    %p29 = scmp.ne.s32.totalorder %s21, %s24
    %p30 = scmp.eq.s32.totalorder %s11, 0
    %p31 = por %p29, %p30
    %p32 = scmp.ne.s32.totalorder %s21, %s24
    %p33 = scmp.eq.s32.totalorder %s16, 1
    %p34 = por %p32, %p33
    %p35 = scmp.ne.s32.totalorder %s24, %s25
    %p36 = scmp.eq.s32.totalorder %s16, 0
    %p37 = por %p35, %p36
    %p38 = scmp.ne.s32.totalorder %s24, %s25
    %p39 = scmp.eq.s32.totalorder %s17, 1
    %p40 = por %p38, %p39
    %p42 = scmp.ne.s32.totalorder %s25, %s41
    %p43 = scmp.eq.s32.totalorder %s17, 0
    %p44 = por %p42, %p43
    %s46 = sadd.s32 %s45, 1
    %p49 = scmp.eq.s32.totalorder %s11, 1
    %p50 = scmp.ne.s32.totalorder %s45, %s47
    %p51 = scmp.eq.s32.totalorder %s11, 0
    %p52 = por %p50, %p51
    %p53 = scmp.ne.s32.totalorder %s45, %s47
    %p54 = scmp.eq.s32.totalorder %s16, 1
    %p55 = por %p53, %p54
    %p56 = scmp.ne.s32.totalorder %s47, %s48
    %p57 = scmp.eq.s32.totalorder %s16, 0
    %p58 = por %p56, %p57
    %p59 = scmp.ne.s32.totalorder %s47, %s48
    %p60 = scmp.eq.s32.totalorder %s17, 1
    %p61 = por %p59, %p60
    %p63 = scmp.ne.s32.totalorder %s48, %s62
    %p64 = scmp.eq.s32.totalorder %s17, 0
    %p65 = por %p63, %p64
    %s67 = sadd.s32 %s66, 1
    %p70 = scmp.eq.s32.totalorder %s11, 1
    %p71 = scmp.ne.s32.totalorder %s66, %s68
    %p72 = scmp.eq.s32.totalorder %s11, 0
    %p73 = por %p71, %p72
    %p74 = scmp.ne.s32.totalorder %s66, %s68
    %p75 = scmp.eq.s32.totalorder %s16, 1
    %p76 = por %p74, %p75
    %p77 = scmp.ne.s32.totalorder %s68, %s69
    %p78 = scmp.eq.s32.totalorder %s16, 0
    %p79 = por %p77, %p78
    %p80 = scmp.ne.s32.totalorder %s68, %s69
    %p81 = scmp.eq.s32.totalorder %s17, 1
    %p82 = por %p80, %p81
    %p84 = scmp.ne.s32.totalorder %s69, %s83
    %p85 = scmp.eq.s32.totalorder %s17, 0
    %p86 = por %p84, %p85
    %s88 = sadd.s32 %s87, 1
    %p91 = scmp.eq.s32.totalorder %s11, 1
    %p92 = scmp.ne.s32.totalorder %s87, %s89
    %p93 = scmp.eq.s32.totalorder %s11, 0
    %p94 = por %p92, %p93
    %p95 = scmp.ne.s32.totalorder %s87, %s89
    %p96 = scmp.eq.s32.totalorder %s16, 1
    %p97 = por %p95, %p96
    %p98 = scmp.ne.s32.totalorder %s89, %s90
    %p99 = scmp.eq.s32.totalorder %s16, 0
    %p100 = por %p98, %p99
    %p101 = scmp.ne.s32.totalorder %s89, %s90
    %p102 = scmp.eq.s32.totalorder %s17, 1
    %p103 = por %p101, %p102
    %p105 = scmp.ne.s32.totalorder %s90, %s104
    %p106 = scmp.eq.s32.totalorder %s17, 0
    %p107 = por %p105, %p106
    %s109 = sadd.s32 %s108, 1
    %p112 = scmp.eq.s32.totalorder %s11, 1
    %p113 = scmp.ne.s32.totalorder %s108, %s110
    %p114 = scmp.eq.s32.totalorder %s11, 0
    %p115 = por %p113, %p114
    %p116 = scmp.ne.s32.totalorder %s108, %s110
    %p117 = scmp.eq.s32.totalorder %s16, 1
    %p118 = por %p116, %p117
    %p119 = scmp.ne.s32.totalorder %s110, %s111
    %p120 = scmp.eq.s32.totalorder %s16, 0
    %p121 = por %p119, %p120
    %p122 = scmp.ne.s32.totalorder %s110, %s111
    %p123 = scmp.eq.s32.totalorder %s17, 1
    %p124 = por %p122, %p123
    %p126 = scmp.ne.s32.totalorder %s111, %s125
    %p127 = scmp.eq.s32.totalorder %s17, 0
    %p128 = por %p126, %p127
    %s129 = ssub.s32 %s11, %s18
    %p130 = scmp.eq.s32.totalorder %s129, 0
    %s132 = sadd.s32 %s131, 1
    %s133 = scalar_select %p130, %s131, %s132
    %p136 = pneg %p130
    %p137 = scmp.eq.s32.totalorder %s11, 1
    %p138 = por %p136, %p137
    %p139 = scmp.ne.s32.totalorder %s131, %s134
    %p140 = scmp.eq.s32.totalorder %s11, 0
    %p141 = por %p139, %p140
    %p142 = scmp.ne.s32.totalorder %s131, %s134
    %p143 = scmp.eq.s32.totalorder %s16, 1
    %p144 = por %p142, %p143
    %p145 = scmp.ne.s32.totalorder %s134, %s135
    %p146 = scmp.eq.s32.totalorder %s16, 0
    %p147 = por %p145, %p146
    %p148 = scmp.ne.s32.totalorder %s134, %s135
    %p149 = scmp.eq.s32.totalorder %s17, 1
    %p150 = por %p148, %p149
    %p152 = scmp.ne.s32.totalorder %s135, %s151
    %p153 = scmp.eq.s32.totalorder %s17, 0
    %p154 = por %p152, %p153
    %p155 = scmp.le.s32.totalorder 1, %s11
    %p156 = scmp.lt.s32.totalorder %s11, 3
    %p157 = pnand %p155, %p156
    %p158 = pneg %p157
    // Predicated region
    $region9: #{inverted_residual_stride1.1} parent=5 // pred_check
      _
    $region10: #{inverted_residual_stride1.1} parent=5 // pred_check_branch
      %160 = sbr.rel (%p157) target = $region12
    $region11: #{inverted_residual_stride1.1} parent=5 // pred_region
      %s161 = ssub.s32 %s11, 1
      // Predicated region
      $region13: #{inverted_residual_stride1.1} parent=11 // pred_check
        %p162 = pneg %p58
      $region14: #{inverted_residual_stride1.1} parent=11 // pred_check_branch
        %164 = sbr.rel (%p162) target = $region16
      $region15: #{inverted_residual_stride1.1} parent=11 // pred_region
        _
      $region16: #{inverted_residual_stride1.1} parent=11 // pred_fallthru
        _
      // Predicated region
      $region17: #{inverted_residual_stride1.1} parent=11 // pred_check
        %p165 = pneg %p79
      $region18: #{inverted_residual_stride1.1} parent=11 // pred_check_branch
        %167 = sbr.rel (%p165) target = $region20
      $region19: #{inverted_residual_stride1.1} parent=11 // pred_region
        _
      $region20: #{inverted_residual_stride1.1} parent=11 // pred_fallthru
        _
      // Predicated region
      $region21: #{inverted_residual_stride1.1} parent=11 // pred_check
        %p168 = pneg %p100
      $region22: #{inverted_residual_stride1.1} parent=11 // pred_check_branch
        %170 = sbr.rel (%p168) target = $region24
      $region23: #{inverted_residual_stride1.1} parent=11 // pred_region
        _
      $region24: #{inverted_residual_stride1.1} parent=11 // pred_fallthru
        _
      // Predicated region
      $region25: #{inverted_residual_stride1.1} parent=11 // pred_check
        %p171 = pneg %p121
      $region26: #{inverted_residual_stride1.1} parent=11 // pred_check_branch
        %173 = sbr.rel (%p171) target = $region28
      $region27: #{inverted_residual_stride1.1} parent=11 // pred_region
        _
      $region28: #{inverted_residual_stride1.1} parent=11 // pred_fallthru
        _
    $region12: #{inverted_residual_stride1.1} parent=5 // pred_fallthru
      _
    %p174 = scmp.lt.s32.totalorder %s11, 2
    // Predicated region
    $region29: #{inverted_residual_stride1.1} parent=5 // pred_check
      %p175 = pneg %p174
    $region30: #{inverted_residual_stride1.1} parent=5 // pred_check_branch
      %177 = sbr.rel (%p175) target = $region32
    $region31: #{inverted_residual_stride1.1} parent=5 // pred_region
      // Predicated region
      $region33: #{inverted_residual_stride1.1} parent=31 // pred_check
        %p178 = pneg %p31
      $region34: #{inverted_residual_stride1.1} parent=31 // pred_check_branch
        %180 = sbr.rel (%p178) target = $region36
      $region35: #{inverted_residual_stride1.1} parent=31 // pred_region
        %p181 = scmp.lt.s32.totalorder %s11, 1
        %s182 = scalar_select %p181, %s11, 1
        %s183 = smul.addr %s182, 8
        %s184 = smul.addr %s183, 8
        %s185 = scalar_lea.vmem %s0, %s184
      $region36: #{inverted_residual_stride1.1} parent=31 // pred_fallthru
        _
    $region32: #{inverted_residual_stride1.1} parent=5 // pred_fallthru
      _
    %p186 = scmp.le.s32.totalorder 1, %s11
    %p187 = scmp.lt.s32.totalorder %s11, 3
    %p188 = pnand %p186, %p187
    %p189 = pneg %p188
    // Predicated region
    $region37: #{inverted_residual_stride1.1} parent=5 // pred_check
      _
    $region38: #{inverted_residual_stride1.1} parent=5 // pred_check_branch
      %191 = sbr.rel (%p188) target = $region40
    $region39: #{inverted_residual_stride1.1} parent=5 // pred_region
      %s192 = ssub.s32 %s11, 1
      %p193 = scmp.lt.s32.totalorder %s16, 1
      %s194 = scalar_select %p193, %s16, 1
      %s195 = smul.addr %s194, 8
      %s196 = smul.addr %s195, 8
      %s197 = scalar_lea.vmem %s0, %s196
      %p198 = pneg %p37
      %p199 = pneg %p34
      %p200 = pneg %p58
      %p201 = pneg %p55
      %p202 = pneg %p79
      %p203 = pneg %p76
      %p204 = pneg %p100
      %p205 = pneg %p97
      %p206 = pneg %p121
      %p207 = pneg %p118
      %p208 = pneg %p147
      %p209 = pneg %p144
      %p210 = scmp.lt.s32.totalorder %s16, 1
      %s211 = scalar_select %p210, %s16, 1
      %s212 = smul.addr %s211, 8
      %s213 = smul.addr %s212, 8
      %s214 = scalar_lea.vmem %s5, %s213
      %p215 = scmp.lt.s32.totalorder %s16, 1
      %s216 = scalar_select %p215, %s16, 1
      %s217 = smul.addr %s216, 8
      %s218 = smul.addr %s217, 8
      %s219 = scalar_lea.vmem %s0, %s218
      %p220 = scmp.lt.s32.totalorder %s16, 1
      %s221 = scalar_select %p220, %s16, 1
      %s222 = smul.addr %s221, 8
      %s223 = smul.addr %s222, 8
      %s224 = scalar_lea.vmem %s5, %s223
      %v226 = vld [vmem:[%s1] sm:$0xf]
      %v227 = vld [vmem:[%s1 + $0x4] sm:$0xf]
      %v228 = vld [vmem:[%s2] sm:$0xf]
      %v229 = vld [vmem:[%s2 + $0x4] sm:$0xf]
      %v230 = vld [vmem:[%s3] sm:$0xff]
      %v231 = vld [vmem:[%s3 + $0x8] sm:$0xff]
      %v232 = vld [vmem:[%s4] ss:$2 sm:$0x3]
      %s233 = scalar_lea.vmem %s4, 1
      %v234 = vld [vmem:[%s233] ss:$2 sm:$0x3]
      %v235 = vld [vmem:[%s219] sm:$0xff]
      %v236 = vld [vmem:[%s219 + $0x8] sm:$0xff]
      %v237 = vld [vmem:[%s219 + $0x10] sm:$0xff]
      %v238 = vld [vmem:[%s219 + $0x18] sm:$0xff]
      %v239 = vld [vmem:[%s219 + $0x20] sm:$0xff]
      %v240 = vld [vmem:[%s219 + $0x28] sm:$0xff]
      %v241 = vld [vmem:[%s219 + $0x30] sm:$0xff]
      %v242 = vld [vmem:[%s219 + $0x38] sm:$0xff]
      %v243 = vpack.c.bf16 %v241, %v239
      %v244 = vpack.c.bf16 %v242, %v240
      %246 = vset.pattern.permute.xlu0 9
      %247 = vperm.xlu0 %246, %v230
      %v248 = vpop.permute.xlu0 %247
      %251 = vset.pattern.permute.xlu0 9
      %252 = vperm.xlu0 %251, %v231
      %v253 = vpop.permute.xlu0 %252
      %v257 = vunpack.c.l.b16 %v226
      %v258 = vunpack.c.l.b16 %v227
      %v259 = vpack.c.b16 %v258, %v257
      %vm260 = vcmask 130048
      %v262 = vsel %vm260, %v259, 0
      %264 = vmatprep.subr.bf16.mxu0 %v244
      %265 = vmatpush1.bf16.msra.mxu0 %v243
      %266 = vmatprep.subr.bf16.mxu0 0
      %267 = vmatpush1.bf16.msra.mxu0 0
      %268 = vmatprep.subr.bf16.mxu0 0
      %269 = vmatpush1.bf16.msra.mxu0 0
      %270 = vmatprep.subr.bf16.mxu0 0
      %271 = vmatpush1.bf16.msra.mxu0 0
      %272 = vmatprep.subr.bf16.mxu0 0
      %273 = vmatpush1.bf16.msra.mxu0 0
      %274 = vmatprep.subr.bf16.mxu0 0
      %275 = vmatpush1.bf16.msra.mxu0 0
      %276 = vmatprep.subr.bf16.mxu0 0
      %277 = vmatpush1.bf16.msra.mxu0 0
      %278 = vmatprep.subr.bf16.mxu0 0
      %279 = vmatpush1.bf16.msra.mxu0 0
      %280 = vmatprep.subr.bf16.mxu0 0
      %281 = vmatpush1.bf16.msra.mxu0 0
      %282 = vmatprep.subr.bf16.mxu0 0
      %283 = vmatpush1.bf16.msra.mxu0 0
      %284 = vmatprep.subr.bf16.mxu0 0
      %285 = vmatpush1.bf16.msra.mxu0 0
      %286 = vmatprep.subr.bf16.mxu0 0
      %287 = vmatpush1.bf16.msra.mxu0 0
      %288 = vmatprep.subr.bf16.mxu0 0
      %289 = vmatpush1.bf16.msra.mxu0 0
      %290 = vmatprep.subr.bf16.mxu0 0
      %291 = vmatpush1.bf16.msra.mxu0 0
      %292 = vmatprep.subr.bf16.mxu0 0
      %293 = vmatpush1.bf16.msra.mxu0 0
      %294 = vmatprep.subr.bf16.mxu0 0
      %295 = vmatpush1.bf16.msra.mxu0 0
      %296 = vmatprep.mubr.bf16.mxu0 0
      %297 = vmatmul.mubr.bf16.gmra.mrb[0].mxu0 %v262
      %v298 = vpop.f32.mrb[0].mxu0
      %v299 = vadd.f32 %v248, %v298
      %v300 = vpop.f32.mrb[0].mxu0
      %v301 = vadd.f32 %v248, %v300
      %v302 = vpop.f32.mrb[0].mxu0
      %v303 = vadd.f32 %v253, %v302
      %v304 = vpop.f32.mrb[0].mxu0
      %v305 = vadd.f32 %v253, %v304
      %306 = vdwg.mxu0
      %v307 = vmax.f32 %v299, 0.0
      %v308 = vmax.f32 %v301, 0.0
      %v309 = vmax.f32 %v303, 0.0
      %v310 = vmax.f32 %v305, 0.0
      %315 = vrot.lane.b32.xlu0 %v307, 16
      %v316 = vpop.permute.xlu0 %315
      %317 = vrot.lane.b32.xlu0 %v308, 16
      %v318 = vpop.permute.xlu0 %317
      %319 = vrot.lane.b32.xlu0 %v309, 16
      %v320 = vpop.permute.xlu0 %319
      %321 = vrot.lane.b32.xlu0 %v310, 16
      %v322 = vpop.permute.xlu0 %321
      %v323 = vsel %vm260, %v316, %v318
      %v324 = vsel %vm260, %v320, %v322
      %v329 = vsel %vm260, 0.0, %v316
      %v330 = vsel %vm260, 0.0, %v320
      %331 = vrot.lane.b32.xlu0 %v307, 112
      %v332 = vpop.permute.xlu0 %331
      %333 = vrot.lane.b32.xlu0 %v308, 112
      %v334 = vpop.permute.xlu0 %333
      %335 = vrot.lane.b32.xlu0 %v309, 112
      %v336 = vpop.permute.xlu0 %335
      %337 = vrot.lane.b32.xlu0 %v310, 112
      %v338 = vpop.permute.xlu0 %337
      %vm339 = vcmask 916480
      %v340 = vsel %vm339, %v332, %v334
      %v341 = vsel %vm339, %v336, %v338
      %v346 = vsel %vm339, %v334, 0.0
      %v347 = vsel %vm339, %v338, 0.0
      %348 = vset.pattern.permute.xlu0 1
      %349 = vperm.xlu0 %348, %v230
      %v350 = vpop.permute.xlu0 %349
      %352 = vset.pattern.permute.xlu0 1
      %353 = vperm.xlu0 %352, %v231
      %v354 = vpop.permute.xlu0 %353
      %v356 = vmul.f32 %v329, %v350
      %v357 = vmul.f32 %v323, %v350
      %v358 = vmul.f32 %v330, %v354
      %v359 = vmul.f32 %v324, %v354
      %360 = vset.pattern.permute.xlu0 4
      %361 = vperm.xlu0 %360, %v230
      %v362 = vpop.permute.xlu0 %361
      %364 = vset.pattern.permute.xlu0 4
      %365 = vperm.xlu0 %364, %v231
      %v366 = vpop.permute.xlu0 %365
      %v368 = vmul.f32 %v307, %v362
      %v369 = vmul.f32 %v308, %v362
      %v370 = vmul.f32 %v309, %v366
      %v371 = vmul.f32 %v310, %v366
      %v372 = vadd.f32 %v356, %v368
      %v373 = vadd.f32 %v357, %v369
      %v374 = vadd.f32 %v358, %v370
      %v375 = vadd.f32 %v359, %v371
      %376 = vset.pattern.permute.xlu0 7
      %377 = vperm.xlu0 %376, %v230
      %v378 = vpop.permute.xlu0 %377
      %380 = vset.pattern.permute.xlu0 7
      %381 = vperm.xlu0 %380, %v231
      %v382 = vpop.permute.xlu0 %381
      %v384 = vmul.f32 %v340, %v378
      %v385 = vmul.f32 %v346, %v378
      %v386 = vmul.f32 %v341, %v382
      %v387 = vmul.f32 %v347, %v382
      %v388 = vadd.f32 %v372, %v384
      %v389 = vadd.f32 %v373, %v385
      %v390 = vadd.f32 %v374, %v386
      %v391 = vadd.f32 %v375, %v387
      %392 = vset.pattern.permute.xlu0 0
      %393 = vperm.xlu0 %392, %v230
      %v394 = vpop.permute.xlu0 %393
      %396 = vset.pattern.permute.xlu0 0
      %397 = vperm.xlu0 %396, %v231
      %v398 = vpop.permute.xlu0 %397
      %v400 = vmul.f32 %v329, %v394
      %v401 = vmul.f32 %v323, %v394
      %v402 = vmul.f32 %v330, %v398
      %v403 = vmul.f32 %v324, %v398
      %404 = vset.pattern.permute.xlu0 3
      %405 = vperm.xlu0 %404, %v230
      %v406 = vpop.permute.xlu0 %405
      %408 = vset.pattern.permute.xlu0 3
      %409 = vperm.xlu0 %408, %v231
      %v410 = vpop.permute.xlu0 %409
      %v412 = vmul.f32 %v307, %v406
      %v413 = vmul.f32 %v308, %v406
      %v414 = vmul.f32 %v309, %v410
      %v415 = vmul.f32 %v310, %v410
      %v416 = vadd.f32 %v400, %v412
      %v417 = vadd.f32 %v401, %v413
      %v418 = vadd.f32 %v402, %v414
      %v419 = vadd.f32 %v403, %v415
      %420 = vset.pattern.permute.xlu0 6
      %421 = vperm.xlu0 %420, %v230
      %v422 = vpop.permute.xlu0 %421
      %424 = vset.pattern.permute.xlu0 6
      %425 = vperm.xlu0 %424, %v231
      %v426 = vpop.permute.xlu0 %425
      %v428 = vmul.f32 %v340, %v422
      %v429 = vmul.f32 %v346, %v422
      %v430 = vmul.f32 %v341, %v426
      %v431 = vmul.f32 %v347, %v426
      %v432 = vadd.f32 %v416, %v428
      %v433 = vadd.f32 %v417, %v429
      %v434 = vadd.f32 %v418, %v430
      %v435 = vadd.f32 %v419, %v431
      %436 = vset.pattern.permute.xlu0 2
      %437 = vperm.xlu0 %436, %v230
      %v438 = vpop.permute.xlu0 %437
      %440 = vset.pattern.permute.xlu0 2
      %441 = vperm.xlu0 %440, %v231
      %v442 = vpop.permute.xlu0 %441
      %v444 = vmul.f32 %v329, %v438
      %v445 = vmul.f32 %v323, %v438
      %v446 = vmul.f32 %v330, %v442
      %v447 = vmul.f32 %v324, %v442
      %448 = vset.pattern.permute.xlu0 5
      %449 = vperm.xlu0 %448, %v230
      %v450 = vpop.permute.xlu0 %449
      %452 = vset.pattern.permute.xlu0 5
      %453 = vperm.xlu0 %452, %v231
      %v454 = vpop.permute.xlu0 %453
      %v456 = vmul.f32 %v307, %v450
      %v457 = vmul.f32 %v308, %v450
      %v458 = vmul.f32 %v309, %v454
      %v459 = vmul.f32 %v310, %v454
      %v460 = vadd.f32 %v444, %v456
      %v461 = vadd.f32 %v445, %v457
      %v462 = vadd.f32 %v446, %v458
      %v463 = vadd.f32 %v447, %v459
      %464 = vset.pattern.permute.xlu0 8
      %465 = vperm.xlu0 %464, %v230
      %v466 = vpop.permute.xlu0 %465
      %468 = vset.pattern.permute.xlu0 8
      %469 = vperm.xlu0 %468, %v231
      %v470 = vpop.permute.xlu0 %469
      %v472 = vmul.f32 %v340, %v466
      %v473 = vmul.f32 %v346, %v466
      %v474 = vmul.f32 %v341, %v470
      %v475 = vmul.f32 %v347, %v470
      %v476 = vadd.f32 %v460, %v472
      %v477 = vadd.f32 %v461, %v473
      %v478 = vadd.f32 %v462, %v474
      %v479 = vadd.f32 %v463, %v475
      %484 = vrot.lane.b32.xlu0 %v432, 1
      %v485 = vpop.permute.xlu0 %484
      %486 = vrot.lane.b32.xlu0 %v433, 1
      %v487 = vpop.permute.xlu0 %486
      %488 = vrot.lane.b32.xlu0 %v434, 1
      %v489 = vpop.permute.xlu0 %488
      %490 = vrot.lane.b32.xlu0 %v435, 1
      %v491 = vpop.permute.xlu0 %490
      %vm492 = vcmask 7168
      %v493 = vsel %vm492, %v485, %v487
      %v494 = vsel %vm492, %v489, %v491
      %v499 = vsel %vm492, 0.0, %v485
      %v500 = vsel %vm492, 0.0, %v489
      %v502 = vlaneseq
      %v503 = vshrl.u32 %v502, 7
      %v504 = vsub.s32 0, %v503
      %v505 = vrot.slane %v232, %v504
      %v506 = vlaneseq
      %v507 = vshrl.u32 %v506, 7
      %v508 = vsub.s32 1, %v507
      %v509 = vrot.slane %v232, %v508
      %v512 = vmul.f32 %v499, %v505
      %v513 = vmul.f32 %v493, %v509
      %v514 = vmul.f32 %v500, %v505
      %v515 = vmul.f32 %v494, %v509
      %v516 = vadd.f32 %v388, %v512
      %v517 = vadd.f32 %v389, %v513
      %v518 = vadd.f32 %v390, %v514
      %v519 = vadd.f32 %v391, %v515
      %524 = vrot.lane.b32.xlu0 %v476, 127
      %v525 = vpop.permute.xlu0 %524
      %526 = vrot.lane.b32.xlu0 %v477, 127
      %v527 = vpop.permute.xlu0 %526
      %528 = vrot.lane.b32.xlu0 %v478, 127
      %v529 = vpop.permute.xlu0 %528
      %530 = vrot.lane.b32.xlu0 %v479, 127
      %v531 = vpop.permute.xlu0 %530
      %vm532 = vcmask 1039360
      %v533 = vsel %vm532, %v525, %v527
      %v534 = vsel %vm532, %v529, %v531
      %v539 = vsel %vm532, %v527, 0.0
      %v540 = vsel %vm532, %v531, 0.0
      %v542 = vlaneseq
      %v543 = vshrl.u32 %v542, 7
      %v544 = vsub.s32 0, %v543
      %v545 = vrot.slane %v234, %v544
      %v546 = vlaneseq
      %v547 = vshrl.u32 %v546, 7
      %v548 = vsub.s32 1, %v547
      %v549 = vrot.slane %v234, %v548
      %v552 = vmul.f32 %v533, %v545
      %v553 = vmul.f32 %v539, %v549
      %v554 = vmul.f32 %v534, %v545
      %v555 = vmul.f32 %v540, %v549
      %v556 = vadd.f32 %v516, %v552
      %v557 = vadd.f32 %v517, %v553
      %v558 = vadd.f32 %v518, %v554
      %v559 = vadd.f32 %v519, %v555
      %560 = vset.pattern.permute.xlu0 10
      %561 = vperm.xlu0 %560, %v230
      %v562 = vpop.permute.xlu0 %561
      %564 = vset.pattern.permute.xlu0 10
      %565 = vperm.xlu0 %564, %v231
      %v566 = vpop.permute.xlu0 %565
      %v568 = vadd.f32 %v556, %v562
      %v569 = vadd.f32 %v557, %v562
      %v570 = vadd.f32 %v558, %v566
      %v571 = vadd.f32 %v559, %v566
      %v572 = vpack.c.bf16 %v570, %v568
      %v573 = vpack.c.bf16 %v571, %v569
      %574 = vset.pattern.permute.xlu0 11
      %575 = vperm.xlu0 %574, %v230
      %v576 = vpop.permute.xlu0 %575
      %578 = vset.pattern.permute.xlu0 11
      %579 = vperm.xlu0 %578, %v231
      %v580 = vpop.permute.xlu0 %579
      %v584 = vunpack.c.l.b16 %v228
      %v585 = vunpack.c.l.b16 %v229
      %v586 = vpack.c.b16 %v585, %v584
      %v588 = vsel %vm260, %v586, 0
      %590 = vmatprep.subr.bf16.mxu0 %v573
      %591 = vmatpush1.bf16.msra.mxu0 %v572
      %592 = vmatprep.subr.bf16.mxu0 0
      %593 = vmatpush1.bf16.msra.mxu0 0
      %594 = vmatprep.subr.bf16.mxu0 0
      %595 = vmatpush1.bf16.msra.mxu0 0
      %596 = vmatprep.subr.bf16.mxu0 0
      %597 = vmatpush1.bf16.msra.mxu0 0
      %598 = vmatprep.subr.bf16.mxu0 0
      %599 = vmatpush1.bf16.msra.mxu0 0
      %600 = vmatprep.subr.bf16.mxu0 0
      %601 = vmatpush1.bf16.msra.mxu0 0
      %602 = vmatprep.subr.bf16.mxu0 0
      %603 = vmatpush1.bf16.msra.mxu0 0
      %604 = vmatprep.subr.bf16.mxu0 0
      %605 = vmatpush1.bf16.msra.mxu0 0
      %606 = vmatprep.subr.bf16.mxu0 0
      %607 = vmatpush1.bf16.msra.mxu0 0
      %608 = vmatprep.subr.bf16.mxu0 0
      %609 = vmatpush1.bf16.msra.mxu0 0
      %610 = vmatprep.subr.bf16.mxu0 0
      %611 = vmatpush1.bf16.msra.mxu0 0
      %612 = vmatprep.subr.bf16.mxu0 0
      %613 = vmatpush1.bf16.msra.mxu0 0
      %614 = vmatprep.subr.bf16.mxu0 0
      %615 = vmatpush1.bf16.msra.mxu0 0
      %616 = vmatprep.subr.bf16.mxu0 0
      %617 = vmatpush1.bf16.msra.mxu0 0
      %618 = vmatprep.subr.bf16.mxu0 0
      %619 = vmatpush1.bf16.msra.mxu0 0
      %620 = vmatprep.subr.bf16.mxu0 0
      %621 = vmatpush1.bf16.msra.mxu0 0
      %622 = vmatprep.mubr.bf16.mxu0 0
      %623 = vmatmul.mubr.bf16.gmra.mrb[0].mxu0 %v588
      %v624 = vpop.f32.mrb[0].mxu0
      %v625 = vadd.f32 %v576, %v624
      %v626 = vpop.f32.mrb[0].mxu0
      %v627 = vadd.f32 %v576, %v626
      %v628 = vpop.f32.mrb[0].mxu0
      %v629 = vadd.f32 %v580, %v628
      %v630 = vpop.f32.mrb[0].mxu0
      %v631 = vadd.f32 %v580, %v630
      %632 = vdwg.mxu0
      %v633 = vmax.f32 %v625, 0.0
      %v634 = vmax.f32 %v627, 0.0
      %v635 = vmax.f32 %v629, 0.0
      %v636 = vmax.f32 %v631, 0.0
      %637 = vst [vmem:[%s224] sm:$0xff] %v235
      %638 = vst [vmem:[%s224 + $0x8] sm:$0xff] %v236
      %639 = vst [vmem:[%s224 + $0x20] sm:$0xff] %v237
      %640 = vst [vmem:[%s224 + $0x28] sm:$0xff] %v238
      %641 = vst [vmem:[%s224 + $0x10] sm:$0xff] %v633
      %642 = vst [vmem:[%s224 + $0x18] sm:$0xff] %v634
      %643 = vst [vmem:[%s224 + $0x30] sm:$0xff] %v635
      %644 = vst [vmem:[%s224 + $0x38] sm:$0xff] %v636
      %p645 = scmp.lt.s32.totalorder %s16, 1
      %s646 = scalar_select %p645, %s16, 1
      %s647 = smul.addr %s646, 8
      %s648 = smul.addr %s647, 8
      %s649 = scalar_lea.vmem %s5, %s648
      // Predicated region
      $region41: #{inverted_residual_stride1.1} parent=39 // pred_check
        %p650 = pneg %p144
      $region42: #{inverted_residual_stride1.1} parent=39 // pred_check_branch
        %652 = sbr.rel (%p650) target = $region44
      $region43: #{inverted_residual_stride1.1} parent=39 // pred_region
        _
      $region44: #{inverted_residual_stride1.1} parent=39 // pred_fallthru
        _
    $region40: #{inverted_residual_stride1.1} parent=5 // pred_fallthru
      _
    %p653 = scmp.le.s32.totalorder 2, %s11
    // Predicated region
    $region45: #{inverted_residual_stride1.1} parent=5 // pred_check
      %p654 = pneg %p653
    $region46: #{inverted_residual_stride1.1} parent=5 // pred_check_branch
      %656 = sbr.rel (%p654) target = $region48
    $region47: #{inverted_residual_stride1.1} parent=5 // pred_region
      %s657 = ssub.s32 %s11, 2
      // Predicated region
      $region49: #{inverted_residual_stride1.1} parent=47 // pred_check
        %p658 = pneg %p150
      $region50: #{inverted_residual_stride1.1} parent=47 // pred_check_branch
        %660 = sbr.rel (%p658) target = $region52
      $region51: #{inverted_residual_stride1.1} parent=47 // pred_region
        %p661 = scmp.lt.s32.totalorder %s17, 1
        %s662 = scalar_select %p661, %s17, 1
        %s663 = smul.addr %s662, 8
        %s664 = smul.addr %s663, 8
        %s665 = scalar_lea.vmem %s5, %s664
      $region52: #{inverted_residual_stride1.1} parent=47 // pred_fallthru
        _
    $region48: #{inverted_residual_stride1.1} parent=5 // pred_fallthru
      _
  $region6: #{inverted_residual_stride1.1} parent=0 // loop_footer
    %s15 = sadd.s32 1, %s11
  $region7: #{inverted_residual_stride1.1} parent=0 // loop_footer_branch
    %10 = sbr.rel target = $region3
  $region8: #{inverted_residual_stride1.1} parent=0 // loop_exit
    _

</llo_original>
